<compile_context>
chip_gen: v7x
topology: tpu7x:2x2x1
jax: 0.10.0
libtpu: 0.0.40
codegen_flags: <defaults>
</compile_context>

<pallas_src>
import jax
import jax.numpy as jnp
from jax.experimental import pallas as pl
from jax.experimental.pallas import tpu as pltpu


def _round_up(n, m):
    return ((n + m - 1) // m) * m


def _sigmoid(x):
    # Numerically stable logistic: exp(-|x|) in (0, 1], no inf intermediate.
    # exp lands on the EUP; the single f32 divide stays on the VPU (exact,
    # keeps the 1e-5 match vs jax.nn.sigmoid; pl.reciprocal(approx=True) would
    # free VALU slots at the cost of accuracy).
    z = jnp.exp(-jnp.abs(x))
    return jnp.where(x >= 0.0, 1.0, z) / (1.0 + z)


def _make_kernel(n_state, hidden, n_actions):
    """Build the fused 3-layer kernel for a given (nState, hidden, nActions)."""
    # Static row offsets of each parameter inside the packed slab.
    w1_r = 0
    b1_r = w1_r + n_state
    w2_r = b1_r + 1
    b2_r = w2_r + hidden
    w3_r = b2_r + 1
    b3_r = w3_r + hidden

    def kernel(x_ref, p_ref, o_ref):
        x = x_ref[...]                                           # (TB, nState) f32

        # ---- layer 1: tanh(x @ W1 + b1), unrolled VPU FMAs over K = nState
        acc = p_ref[b1_r:b1_r + 1, :hidden]                      # (1, hidden) bias
        for k in range(n_state):
            acc = acc + x[:, k:k + 1] * p_ref[w1_r + k:w1_r + k + 1, :hidden]
        h1 = jnp.tanh(acc)                                       # (TB, hidden)

        # ---- layer 2: sigmoid(h1 @ W2 + b2), K = hidden
        acc = p_ref[b2_r:b2_r + 1, :hidden]
        for k in range(hidden):
            acc = acc + h1[:, k:k + 1] * p_ref[w2_r + k:w2_r + k + 1, :hidden]
        h2 = _sigmoid(acc)                                       # (TB, hidden)

        # ---- layer 3: sigmoid(h2 @ W3 + b3), K = hidden
        acc = p_ref[b3_r:b3_r + 1, :n_actions]
        for k in range(hidden):
            acc = acc + h2[:, k:k + 1] * p_ref[w3_r + k:w3_r + k + 1, :n_actions]
        o_ref[...] = _sigmoid(acc)                               # (TB, nActions)

    return kernel


def pack_params(params):
    """Pack W1/b1/W2/b2/W3/b3 into one (rows_pad, 128) f32 slab (one DMA).

    Weights are stored in (in, out) layout (= transpose of PyTorch's (out, in)).
    Call this once outside the hot loop in real usage.
    """
    W1, b1 = params["W1"], params["b1"]
    W2, b2 = params["W2"], params["b2"]
    W3, b3 = params["W3"], params["b3"]
    n_state, hidden = W1.shape
    n_actions = W3.shape[1]

    rows = n_state + 2 * hidden + 3
    rows_pad = _round_up(rows, 8)

    slab = jnp.zeros((rows_pad, 128), jnp.float32)
    r = 0
    slab = slab.at[r:r + n_state, :hidden].set(W1.astype(jnp.float32)); r += n_state
    slab = slab.at[r, :hidden].set(b1.reshape(-1).astype(jnp.float32)); r += 1
    slab = slab.at[r:r + hidden, :hidden].set(W2.astype(jnp.float32)); r += hidden
    slab = slab.at[r, :hidden].set(b2.reshape(-1).astype(jnp.float32)); r += 1
    slab = slab.at[r:r + hidden, :n_actions].set(W3.astype(jnp.float32)); r += hidden
    slab = slab.at[r, :n_actions].set(b3.reshape(-1).astype(jnp.float32)); r += 1
    return slab, (n_state, hidden, n_actions)


def nfq_forward_packed(x, slab, n_state, hidden, n_actions, *, block_b=1024):
    """Run the fused forward kernel on a pre-packed parameter slab."""
    x = x.astype(jnp.float32)
    batch = x.shape[0]
    assert x.shape[1] == n_state

    # Batch tile: multiple of 8 sublanes, default 1024 rows, clamped to batch.
    # VMEM use per tile is a few KiB, far under even v7x's 64 MiB / 32 MiB
    # default scoped limit, so no vmem_limit_bytes override is needed.
    tb = _round_up(min(block_b, _round_up(batch, 8)), 8)
    batch_pad = _round_up(batch, tb)
    if batch_pad != batch:
        x = jnp.pad(x, ((0, batch_pad - batch), (0, 0)))

    grid = (pl.cdiv(batch_pad, tb),)
    kernel = _make_kernel(n_state, hidden, n_actions)

    out = pl.pallas_call(
        kernel,
        out_shape=jax.ShapeDtypeStruct((batch_pad, n_actions), jnp.float32),
        grid=grid,
        in_specs=[
            pl.BlockSpec((tb, n_state), lambda i: (i, 0)),   # x: tiled over batch
            pl.BlockSpec(slab.shape, lambda i: (0, 0)),      # params: resident, DMA'd once
        ],
        out_specs=pl.BlockSpec((tb, n_actions), lambda i: (i, 0)),
        compiler_params=pltpu.CompilerParams(
            dimension_semantics=("parallel",),               # shard batch across v7x's 2 TCs
        ),
    )(x, slab)

    return out[:batch] if batch_pad != batch else out


def nfq_forward(x, params, *, block_b=1024):
    """Fused NFQnet forward.  x: (B, nState) f32 -> (B, nActions) in (0, 1)."""
    slab, (n_state, hidden, n_actions) = pack_params(params)
    return nfq_forward_packed(x, slab, n_state, hidden, n_actions, block_b=block_b)


def init_params(key, n_state, n_actions, hidden=5):
    """Deterministic init matching PyTorch Linear's U(-1/sqrt(in), 1/sqrt(in))."""
    ks = jax.random.split(key, 6)

    def uniform(k, shape, fan_in):
        bound = 1.0 / jnp.sqrt(float(fan_in))
        return jax.random.uniform(k, shape, jnp.float32, -bound, bound)

    # Stored directly in (in, out) layout == W.T of PyTorch's (out, in).
    return {
        "W1": uniform(ks[0], (n_state, hidden), n_state),
        "b1": uniform(ks[1], (hidden,), n_state),
        "W2": uniform(ks[2], (hidden, hidden), hidden),
        "b2": uniform(ks[3], (hidden,), hidden),
        "W3": uniform(ks[4], (hidden, n_actions), hidden),
        "b3": uniform(ks[5], (n_actions,), hidden),
    }


def nfq_reference(x, params):
    """Plain-JAX reference for correctness checking."""
    h1 = jnp.tanh(x @ params["W1"] + params["b1"])
    h2 = jax.nn.sigmoid(h1 @ params["W2"] + params["b2"])
    return jax.nn.sigmoid(h2 @ params["W3"] + params["b3"])


if __name__ == "__main__":
    key = jax.random.PRNGKey(0)
    k_x, k_p = jax.random.split(key)

    # Cartpole-ish sizes: 4 state variables, 2 actions, small ragged batch.
    batch, n_state, n_actions = 33, 4, 2

    x = jax.random.normal(k_x, (batch, n_state), dtype=jnp.float32)
    params = init_params(k_p, n_state, n_actions)
    ref = nfq_reference(x, params)

    # Multi-step grid (block_b=16 -> grid=(3,)): exercises batch tiling + padding.
    out_tiled = jax.block_until_ready(nfq_forward(x, params, block_b=16))
    # Single-step grid with the default (large) batch tile.
    out_single = jax.block_until_ready(nfq_forward(x, params))

    assert out_tiled.shape == (batch, n_actions)
    assert out_single.shape == (batch, n_actions)
    assert jnp.allclose(out_tiled, ref, atol=1e-5, rtol=1e-5), "tiled mismatch vs reference"
    assert jnp.allclose(out_single, ref, atol=1e-5, rtol=1e-5), "single-tile mismatch vs reference"

    print("KERNEL_OK")
</pallas_src>

<mosaic_0001>
module attributes {stable_mosaic.version = 11 : i64} {
  func.func @kernel(%arg0: i32, %arg1: memref<16x4xf32, #tpu.memory_space<vmem>>, %arg2: memref<24x128xf32, #tpu.memory_space<vmem>>, %arg3: memref<16x2xf32, #tpu.memory_space<vmem>>) attributes {dimension_semantics = [#tpu.dimension_semantics<parallel>], iteration_bounds = array<i64: 3>, scalar_prefetch = 0 : i64, scratch_operands = 0 : i64, tpu.core_type = #tpu.core_type<tc>, window_params = [{transform_indices = @transform_0, window_bounds = array<i64: 16, 4>}, {pipeline_mode = #tpu.pipeline_mode<synchronous>, transform_indices = @transform_1, window_bounds = array<i64: 24, 128>}, {transform_indices = @transform_2, window_bounds = array<i64: 16, 2>}]} {
    %c0 = arith.constant 0 : index
    %c0_0 = arith.constant 0 : index
    %0 = vector.load %arg1[%c0, %c0_0] : memref<16x4xf32, #tpu.memory_space<vmem>>, vector<16x4xf32>
    %c4 = arith.constant 4 : index
    %c0_1 = arith.constant 0 : index
    %1 = vector.load %arg2[%c4, %c0_1] : memref<24x128xf32, #tpu.memory_space<vmem>>, vector<1x5xf32>
    %2 = vector.extract_strided_slice %0 {offsets = [0, 0], sizes = [16, 1], strides = [1, 1]} : vector<16x4xf32> to vector<16x1xf32>
    %c0_2 = arith.constant 0 : index
    %c0_3 = arith.constant 0 : index
    %3 = vector.load %arg2[%c0_2, %c0_3] : memref<24x128xf32, #tpu.memory_space<vmem>>, vector<1x5xf32>
    %4 = vector.broadcast %2 : vector<16x1xf32> to vector<16x5xf32>
    %5 = vector.broadcast %3 : vector<1x5xf32> to vector<16x5xf32>
    %6 = arith.mulf %4, %5 : vector<16x5xf32>
    %7 = vector.broadcast %1 : vector<1x5xf32> to vector<16x5xf32>
    %8 = arith.addf %7, %6 : vector<16x5xf32>
    %9 = vector.extract_strided_slice %0 {offsets = [0, 1], sizes = [16, 1], strides = [1, 1]} : vector<16x4xf32> to vector<16x1xf32>
    %c1 = arith.constant 1 : index
    %c0_4 = arith.constant 0 : index
    %10 = vector.load %arg2[%c1, %c0_4] : memref<24x128xf32, #tpu.memory_space<vmem>>, vector<1x5xf32>
    %11 = vector.broadcast %9 : vector<16x1xf32> to vector<16x5xf32>
    %12 = vector.broadcast %10 : vector<1x5xf32> to vector<16x5xf32>
    %13 = arith.mulf %11, %12 : vector<16x5xf32>
    %14 = arith.addf %8, %13 : vector<16x5xf32>
    %15 = vector.extract_strided_slice %0 {offsets = [0, 2], sizes = [16, 1], strides = [1, 1]} : vector<16x4xf32> to vector<16x1xf32>
    %c2 = arith.constant 2 : index
    %c0_5 = arith.constant 0 : index
    %16 = vector.load %arg2[%c2, %c0_5] : memref<24x128xf32, #tpu.memory_space<vmem>>, vector<1x5xf32>
    %17 = vector.broadcast %15 : vector<16x1xf32> to vector<16x5xf32>
    %18 = vector.broadcast %16 : vector<1x5xf32> to vector<16x5xf32>
    %19 = arith.mulf %17, %18 : vector<16x5xf32>
    %20 = arith.addf %14, %19 : vector<16x5xf32>
    %21 = vector.extract_strided_slice %0 {offsets = [0, 3], sizes = [16, 1], strides = [1, 1]} : vector<16x4xf32> to vector<16x1xf32>
    %c3 = arith.constant 3 : index
    %c0_6 = arith.constant 0 : index
    %22 = vector.load %arg2[%c3, %c0_6] : memref<24x128xf32, #tpu.memory_space<vmem>>, vector<1x5xf32>
    %23 = vector.broadcast %21 : vector<16x1xf32> to vector<16x5xf32>
    %24 = vector.broadcast %22 : vector<1x5xf32> to vector<16x5xf32>
    %25 = arith.mulf %23, %24 : vector<16x5xf32>
    %26 = arith.addf %20, %25 : vector<16x5xf32>
    %27 = math.tanh %26 : vector<16x5xf32>
    %c10 = arith.constant 10 : index
    %c0_7 = arith.constant 0 : index
    %28 = vector.load %arg2[%c10, %c0_7] : memref<24x128xf32, #tpu.memory_space<vmem>>, vector<1x5xf32>
    %29 = vector.extract_strided_slice %27 {offsets = [0, 0], sizes = [16, 1], strides = [1, 1]} : vector<16x5xf32> to vector<16x1xf32>
    %c5 = arith.constant 5 : index
    %c0_8 = arith.constant 0 : index
    %30 = vector.load %arg2[%c5, %c0_8] : memref<24x128xf32, #tpu.memory_space<vmem>>, vector<1x5xf32>
    %31 = vector.broadcast %29 : vector<16x1xf32> to vector<16x5xf32>
    %32 = vector.broadcast %30 : vector<1x5xf32> to vector<16x5xf32>
    %33 = arith.mulf %31, %32 : vector<16x5xf32>
    %34 = vector.broadcast %28 : vector<1x5xf32> to vector<16x5xf32>
    %35 = arith.addf %34, %33 : vector<16x5xf32>
    %36 = vector.extract_strided_slice %27 {offsets = [0, 1], sizes = [16, 1], strides = [1, 1]} : vector<16x5xf32> to vector<16x1xf32>
    %c6 = arith.constant 6 : index
    %c0_9 = arith.constant 0 : index
    %37 = vector.load %arg2[%c6, %c0_9] : memref<24x128xf32, #tpu.memory_space<vmem>>, vector<1x5xf32>
    %38 = vector.broadcast %36 : vector<16x1xf32> to vector<16x5xf32>
    %39 = vector.broadcast %37 : vector<1x5xf32> to vector<16x5xf32>
    %40 = arith.mulf %38, %39 : vector<16x5xf32>
    %41 = arith.addf %35, %40 : vector<16x5xf32>
    %42 = vector.extract_strided_slice %27 {offsets = [0, 2], sizes = [16, 1], strides = [1, 1]} : vector<16x5xf32> to vector<16x1xf32>
    %c7 = arith.constant 7 : index
    %c0_10 = arith.constant 0 : index
    %43 = vector.load %arg2[%c7, %c0_10] : memref<24x128xf32, #tpu.memory_space<vmem>>, vector<1x5xf32>
    %44 = vector.broadcast %42 : vector<16x1xf32> to vector<16x5xf32>
    %45 = vector.broadcast %43 : vector<1x5xf32> to vector<16x5xf32>
    %46 = arith.mulf %44, %45 : vector<16x5xf32>
    %47 = arith.addf %41, %46 : vector<16x5xf32>
    %48 = vector.extract_strided_slice %27 {offsets = [0, 3], sizes = [16, 1], strides = [1, 1]} : vector<16x5xf32> to vector<16x1xf32>
    %c8 = arith.constant 8 : index
    %c0_11 = arith.constant 0 : index
    %49 = vector.load %arg2[%c8, %c0_11] : memref<24x128xf32, #tpu.memory_space<vmem>>, vector<1x5xf32>
    %50 = vector.broadcast %48 : vector<16x1xf32> to vector<16x5xf32>
    %51 = vector.broadcast %49 : vector<1x5xf32> to vector<16x5xf32>
    %52 = arith.mulf %50, %51 : vector<16x5xf32>
    %53 = arith.addf %47, %52 : vector<16x5xf32>
    %54 = vector.extract_strided_slice %27 {offsets = [0, 4], sizes = [16, 1], strides = [1, 1]} : vector<16x5xf32> to vector<16x1xf32>
    %c9 = arith.constant 9 : index
    %c0_12 = arith.constant 0 : index
    %55 = vector.load %arg2[%c9, %c0_12] : memref<24x128xf32, #tpu.memory_space<vmem>>, vector<1x5xf32>
    %56 = vector.broadcast %54 : vector<16x1xf32> to vector<16x5xf32>
    %57 = vector.broadcast %55 : vector<1x5xf32> to vector<16x5xf32>
    %58 = arith.mulf %56, %57 : vector<16x5xf32>
    %59 = arith.addf %53, %58 : vector<16x5xf32>
    %60 = math.absf %59 : vector<16x5xf32>
    %cst = arith.constant 0.000000e+00 : f32
    %61 = vector.broadcast %cst : f32 to vector<16x5xf32>
    %62 = arith.subf %61, %60 : vector<16x5xf32>
    %63 = math.exp %62 : vector<16x5xf32>
    %cst_13 = arith.constant 0.000000e+00 : f32
    %64 = vector.broadcast %cst_13 : f32 to vector<16x5xf32>
    %65 = arith.cmpf oge, %59, %64 : vector<16x5xf32>
    %cst_14 = arith.constant 1.000000e+00 : f32
    %66 = vector.broadcast %cst_14 : f32 to vector<16x5xf32>
    %67 = arith.select %65, %66, %63 : vector<16x5xi1>, vector<16x5xf32>
    %cst_15 = arith.constant 1.000000e+00 : f32
    %68 = vector.broadcast %cst_15 : f32 to vector<16x5xf32>
    %69 = arith.addf %68, %63 : vector<16x5xf32>
    %70 = arith.divf %67, %69 : vector<16x5xf32>
    %c16 = arith.constant 16 : index
    %c0_16 = arith.constant 0 : index
    %71 = vector.load %arg2[%c16, %c0_16] : memref<24x128xf32, #tpu.memory_space<vmem>>, vector<1x2xf32>
    %72 = vector.extract_strided_slice %70 {offsets = [0, 0], sizes = [16, 1], strides = [1, 1]} : vector<16x5xf32> to vector<16x1xf32>
    %c11 = arith.constant 11 : index
    %c0_17 = arith.constant 0 : index
    %73 = vector.load %arg2[%c11, %c0_17] : memref<24x128xf32, #tpu.memory_space<vmem>>, vector<1x2xf32>
    %74 = vector.broadcast %72 : vector<16x1xf32> to vector<16x2xf32>
    %75 = vector.broadcast %73 : vector<1x2xf32> to vector<16x2xf32>
    %76 = arith.mulf %74, %75 : vector<16x2xf32>
    %77 = vector.broadcast %71 : vector<1x2xf32> to vector<16x2xf32>
    %78 = arith.addf %77, %76 : vector<16x2xf32>
    %79 = vector.extract_strided_slice %70 {offsets = [0, 1], sizes = [16, 1], strides = [1, 1]} : vector<16x5xf32> to vector<16x1xf32>
    %c12 = arith.constant 12 : index
    %c0_18 = arith.constant 0 : index
    %80 = vector.load %arg2[%c12, %c0_18] : memref<24x128xf32, #tpu.memory_space<vmem>>, vector<1x2xf32>
    %81 = vector.broadcast %79 : vector<16x1xf32> to vector<16x2xf32>
    %82 = vector.broadcast %80 : vector<1x2xf32> to vector<16x2xf32>
    %83 = arith.mulf %81, %82 : vector<16x2xf32>
    %84 = arith.addf %78, %83 : vector<16x2xf32>
    %85 = vector.extract_strided_slice %70 {offsets = [0, 2], sizes = [16, 1], strides = [1, 1]} : vector<16x5xf32> to vector<16x1xf32>
    %c13 = arith.constant 13 : index
    %c0_19 = arith.constant 0 : index
    %86 = vector.load %arg2[%c13, %c0_19] : memref<24x128xf32, #tpu.memory_space<vmem>>, vector<1x2xf32>
    %87 = vector.broadcast %85 : vector<16x1xf32> to vector<16x2xf32>
    %88 = vector.broadcast %86 : vector<1x2xf32> to vector<16x2xf32>
    %89 = arith.mulf %87, %88 : vector<16x2xf32>
    %90 = arith.addf %84, %89 : vector<16x2xf32>
    %91 = vector.extract_strided_slice %70 {offsets = [0, 3], sizes = [16, 1], strides = [1, 1]} : vector<16x5xf32> to vector<16x1xf32>
    %c14 = arith.constant 14 : index
    %c0_20 = arith.constant 0 : index
    %92 = vector.load %arg2[%c14, %c0_20] : memref<24x128xf32, #tpu.memory_space<vmem>>, vector<1x2xf32>
    %93 = vector.broadcast %91 : vector<16x1xf32> to vector<16x2xf32>
    %94 = vector.broadcast %92 : vector<1x2xf32> to vector<16x2xf32>
    %95 = arith.mulf %93, %94 : vector<16x2xf32>
    %96 = arith.addf %90, %95 : vector<16x2xf32>
    %97 = vector.extract_strided_slice %70 {offsets = [0, 4], sizes = [16, 1], strides = [1, 1]} : vector<16x5xf32> to vector<16x1xf32>
    %c15 = arith.constant 15 : index
    %c0_21 = arith.constant 0 : index
    %98 = vector.load %arg2[%c15, %c0_21] : memref<24x128xf32, #tpu.memory_space<vmem>>, vector<1x2xf32>
    %99 = vector.broadcast %97 : vector<16x1xf32> to vector<16x2xf32>
    %100 = vector.broadcast %98 : vector<1x2xf32> to vector<16x2xf32>
    %101 = arith.mulf %99, %100 : vector<16x2xf32>
    %102 = arith.addf %96, %101 : vector<16x2xf32>
    %103 = math.absf %102 : vector<16x2xf32>
    %cst_22 = arith.constant 0.000000e+00 : f32
    %104 = vector.broadcast %cst_22 : f32 to vector<16x2xf32>
    %105 = arith.subf %104, %103 : vector<16x2xf32>
    %106 = math.exp %105 : vector<16x2xf32>
    %cst_23 = arith.constant 0.000000e+00 : f32
    %107 = vector.broadcast %cst_23 : f32 to vector<16x2xf32>
    %108 = arith.cmpf oge, %102, %107 : vector<16x2xf32>
    %cst_24 = arith.constant 1.000000e+00 : f32
    %109 = vector.broadcast %cst_24 : f32 to vector<16x2xf32>
    %110 = arith.select %108, %109, %106 : vector<16x2xi1>, vector<16x2xf32>
    %cst_25 = arith.constant 1.000000e+00 : f32
    %111 = vector.broadcast %cst_25 : f32 to vector<16x2xf32>
    %112 = arith.addf %111, %106 : vector<16x2xf32>
    %113 = arith.divf %110, %112 : vector<16x2xf32>
    %c0_26 = arith.constant 0 : index
    %c0_27 = arith.constant 0 : index
    %114 = vector.load %arg3[%c0_26, %c0_27] : memref<16x2xf32, #tpu.memory_space<vmem>>, vector<16x2xf32>
    tpu.vector_store %arg3[%c0_26, %c0_27], %113 {strides = array<i32>} : memref<16x2xf32, #tpu.memory_space<vmem>>, vector<16x2xf32>,
    return
  }
  func.func @transform_0(%arg0: i32) -> (i32, i32) {
    %c0_i32 = arith.constant 0 : i32
    %c0_i32_0 = arith.constant 0 : i32
    return %arg0, %c0_i32 : i32, i32
  }
  func.func @transform_1(%arg0: i32) -> (i32, i32) {
    %c0_i32 = arith.constant 0 : i32
    %c0_i32_0 = arith.constant 0 : i32
    %c0_i32_1 = arith.constant 0 : i32
    return %c0_i32, %c0_i32_0 : i32, i32
  }
  func.func @transform_2(%arg0: i32) -> (i32, i32) {
    %c0_i32 = arith.constant 0 : i32
    %c0_i32_0 = arith.constant 0 : i32
    return %arg0, %c0_i32 : i32, i32
  }
}

</mosaic_0001>

<llo_original>
// kernel: tpu_custom_call.1
$region0: #{tpu_custom_call.1}
  #allocation0 [shape = 'u32[]', space=smem, size = 0x4, offset = 0x4, fixed_abs, tag = 'smem constant byte address 0x4 - core index']
  #allocation1 [shape = 'u32[144,128]{1,0:T(1,128)}', space=vmem, size = 0x12000, scoped, tag = 'internal scratch']
  %s0 = inlined_call_operand.vmem [shape: f32[48,4], index: 0, kind: input, shape index: {}]
  %s1 = inlined_call_operand.vmem [shape: f32[24,128], index: 1, kind: input, shape index: {}]
  %s2 = inlined_call_operand.vmem [shape: f32[48,2], index: 2, kind: output, shape index: {}]
  %s3 = sld [smem:[#allocation0]]
  $region41: #{tpu_custom_call.1} parent=0
    _
  %s5 = ssub.s32 1, %s3
  %s6 = scalar_select 0, %s5, %s3
  loop: start=0, step=1, limit=5
  $region2: #{tpu_custom_call.1} parent=0 // loop_pre_header
    _
  $region3: #{tpu_custom_call.1} parent=0 // loop_header
    %s8 = sphi 0, %s12
    %p9 = scmp.ge.s32.totalorder %s8, 5
    %s18 = sphi 0, %s20
    %s21 = sphi 0, %s18
    %s22 = sphi 0, %s21
    %s38 = sphi 0, %s22
    %s42 = sphi 0, %s42
    %s44 = sphi 0, %s42
    %s45 = sphi 0, %s44
    %s59 = sphi 0, %s45
    %s65 = sphi 0, %s67
    %s68 = sphi 0, %s65
    %s69 = sphi 0, %s68
    %s85 = sphi 0, %s69
  $region4: #{tpu_custom_call.1} parent=0 // loop_header_branch
    %11 = sbr.rel (%p9) target = $region8
  $region5: #{tpu_custom_call.1} parent=0 // loop_body
    %s13 = ssub.s32 %s8, 1
    %s14 = ssub.s32 %s8, 2
    %s15 = sadd.s32 %s8, 1
    %s16 = ssub.s32 %s8, %s15
    %p17 = scmp.eq.s32.totalorder %s16, 0
    %s19 = sadd.s32 %s18, 1
    %s20 = scalar_select %p17, %s18, %s19
    %p23 = pneg %p17
    %p24 = scmp.eq.s32.totalorder %s8, 2
    %p25 = por %p23, %p24
    %p26 = scmp.ne.s32.totalorder %s18, %s21
    %p27 = scmp.eq.s32.totalorder %s8, 0
    %p28 = por %p26, %p27
    %p29 = scmp.ne.s32.totalorder %s18, %s21
    %p30 = scmp.eq.s32.totalorder %s13, 2
    %p31 = por %p29, %p30
    %p32 = scmp.ne.s32.totalorder %s21, %s22
    %p33 = scmp.eq.s32.totalorder %s13, 0
    %p34 = por %p32, %p33
    %p35 = scmp.ne.s32.totalorder %s21, %s22
    %p36 = scmp.eq.s32.totalorder %s14, 2
    %p37 = por %p35, %p36
    %p39 = scmp.ne.s32.totalorder %s22, %s38
    %p40 = scmp.eq.s32.totalorder %s14, 0
    %p41 = por %p39, %p40
    %s43 = sadd.s32 %s42, 1
    %p46 = scmp.eq.s32.totalorder %s8, 2
    %p47 = scmp.ne.s32.totalorder %s42, %s44
    %p48 = scmp.eq.s32.totalorder %s8, 0
    %p49 = por %p47, %p48
    %p50 = scmp.ne.s32.totalorder %s42, %s44
    %p51 = scmp.eq.s32.totalorder %s13, 2
    %p52 = por %p50, %p51
    %p53 = scmp.ne.s32.totalorder %s44, %s45
    %p54 = scmp.eq.s32.totalorder %s13, 0
    %p55 = por %p53, %p54
    %p56 = scmp.ne.s32.totalorder %s44, %s45
    %p57 = scmp.eq.s32.totalorder %s14, 2
    %p58 = por %p56, %p57
    %p60 = scmp.ne.s32.totalorder %s45, %s59
    %p61 = scmp.eq.s32.totalorder %s14, 0
    %p62 = por %p60, %p61
    %s63 = ssub.s32 %s8, %s15
    %p64 = scmp.eq.s32.totalorder %s63, 0
    %s66 = sadd.s32 %s65, 1
    %s67 = scalar_select %p64, %s65, %s66
    %p70 = pneg %p64
    %p71 = scmp.eq.s32.totalorder %s8, 2
    %p72 = por %p70, %p71
    %p73 = scmp.ne.s32.totalorder %s65, %s68
    %p74 = scmp.eq.s32.totalorder %s8, 0
    %p75 = por %p73, %p74
    %p76 = scmp.ne.s32.totalorder %s65, %s68
    %p77 = scmp.eq.s32.totalorder %s13, 2
    %p78 = por %p76, %p77
    %p79 = scmp.ne.s32.totalorder %s68, %s69
    %p80 = scmp.eq.s32.totalorder %s13, 0
    %p81 = por %p79, %p80
    %p82 = scmp.ne.s32.totalorder %s68, %s69
    %p83 = scmp.eq.s32.totalorder %s14, 2
    %p84 = por %p82, %p83
    %p86 = scmp.ne.s32.totalorder %s69, %s85
    %p87 = scmp.eq.s32.totalorder %s14, 0
    %p88 = por %p86, %p87
    %p89 = scmp.le.s32.totalorder 1, %s8
    %p90 = scmp.lt.s32.totalorder %s8, 4
    %p91 = pnand %p89, %p90
    %p92 = pneg %p91
    // Predicated region
    $region9: #{tpu_custom_call.1} parent=5 // pred_check
      _
    $region10: #{tpu_custom_call.1} parent=5 // pred_check_branch
      %94 = sbr.rel (%p91) target = $region12
    $region11: #{tpu_custom_call.1} parent=5 // pred_region
      %s95 = ssub.s32 %s8, 1
      // Predicated region
      $region13: #{tpu_custom_call.1} parent=11 // pred_check
        %p96 = pneg %p55
      $region14: #{tpu_custom_call.1} parent=11 // pred_check_branch
        %98 = sbr.rel (%p96) target = $region16
      $region15: #{tpu_custom_call.1} parent=11 // pred_region
        _
      $region16: #{tpu_custom_call.1} parent=11 // pred_fallthru
        _
    $region12: #{tpu_custom_call.1} parent=5 // pred_fallthru
      _
    %p99 = scmp.lt.s32.totalorder %s8, 3
    // Predicated region
    $region17: #{tpu_custom_call.1} parent=5 // pred_check
      %p100 = pneg %p99
    $region18: #{tpu_custom_call.1} parent=5 // pred_check_branch
      %102 = sbr.rel (%p100) target = $region20
    $region19: #{tpu_custom_call.1} parent=5 // pred_region
      // Predicated region
      $region21: #{tpu_custom_call.1} parent=19 // pred_check
        %p103 = pneg %p28
      $region22: #{tpu_custom_call.1} parent=19 // pred_check_branch
        %105 = sbr.rel (%p103) target = $region24
      $region23: #{tpu_custom_call.1} parent=19 // pred_region
        %s106 = smul.u32 2, %s8
        %p107 = scmp.lt.s32.totalorder %s106, 5
        %s108 = scalar_select %p107, %s106, 5
        %s109 = smul.addr %s108, 8
        %s110 = scalar_lea.vmem %s0, %s109
        %s111 = smul.u32 2, %s8
      $region24: #{tpu_custom_call.1} parent=19 // pred_fallthru
        _
    $region20: #{tpu_custom_call.1} parent=5 // pred_fallthru
      _
    %p112 = scmp.le.s32.totalorder 1, %s8
    %p113 = scmp.lt.s32.totalorder %s8, 4
    %p114 = pnand %p112, %p113
    %p115 = pneg %p114
    // Predicated region
    $region25: #{tpu_custom_call.1} parent=5 // pred_check
      _
    $region26: #{tpu_custom_call.1} parent=5 // pred_check_branch
      %117 = sbr.rel (%p114) target = $region28
    $region27: #{tpu_custom_call.1} parent=5 // pred_region
      %s118 = ssub.s32 %s8, 1
      %s119 = smul.u32 2, %s13
      %p120 = scmp.lt.s32.totalorder %s119, 5
      %s121 = scalar_select %p120, %s119, 5
      %s122 = smul.addr %s121, 8
      %s123 = scalar_lea.vmem %s0, %s122
      %p124 = pneg %p34
      %p125 = pneg %p31
      %p126 = pneg %p55
      %p127 = pneg %p52
      %p128 = pneg %p81
      %p129 = pneg %p78
      %s130 = smul.u32 2, %s13
      %p131 = scmp.lt.s32.totalorder %s130, 5
      %s132 = scalar_select %p131, %s130, 5
      %s133 = smul.addr %s132, 8
      %s134 = scalar_lea.vmem %s2, %s133
      %s135 = smul.u32 2, %s13
      %p136 = scmp.lt.s32.totalorder %s135, 5
      %s137 = scalar_select %p136, %s135, 5
      %s138 = smul.addr %s137, 8
      %s139 = scalar_lea.vmem %s0, %s138
      %s140 = smul.u32 2, %s13
      %s141 = smul.u32 2, %s13
      %p142 = scmp.lt.s32.totalorder %s141, 5
      %s143 = scalar_select %p142, %s141, 5
      %s144 = smul.addr %s143, 8
      %s145 = scalar_lea.vmem %s2, %s144
      %s146 = smul.u32 2, %s13
      %v147 = vld [vmem:[%s139] sm:$0xff]
      %v148 = vld [vmem:[%s139 + $0x8] sm:$0xff]
      %v149 = vld [vmem:[%s1 + $0x4] sm:$0x1]
      %v150 = vld [vmem:[%s1] sm:$0x1]
      %152 = vset.pattern.permute.xlu0 0
      %153 = vperm.xlu0 %152, %v147
      %v154 = vpop.permute.xlu0 %153
      %157 = vset.pattern.permute.xlu0 0
      %158 = vperm.xlu0 %157, %v148
      %v159 = vpop.permute.xlu0 %158
      %v161 = vlaneseq
      %v162 = vshrl.u32 %v161, 7
      %v163 = vsub.s32 0, %v162
      %v164 = vrot.slane %v150, %v163
      %v165 = vmul.f32 %v154, %v164
      %v166 = vmul.f32 %v159, %v164
      %v167 = vlaneseq
      %v168 = vshrl.u32 %v167, 7
      %v169 = vsub.s32 0, %v168
      %v170 = vrot.slane %v149, %v169
      %v171 = vadd.f32 %v170, %v165
      %v172 = vadd.f32 %v170, %v166
      %v173 = vld [vmem:[%s1 + $0x1] sm:$0x1]
      %174 = vset.pattern.permute.xlu0 1
      %175 = vperm.xlu0 %174, %v147
      %v176 = vpop.permute.xlu0 %175
      %178 = vset.pattern.permute.xlu0 1
      %179 = vperm.xlu0 %178, %v148
      %v180 = vpop.permute.xlu0 %179
      %v182 = vlaneseq
      %v183 = vshrl.u32 %v182, 7
      %v184 = vsub.s32 0, %v183
      %v185 = vrot.slane %v173, %v184
      %v186 = vmul.f32 %v176, %v185
      %v187 = vmul.f32 %v180, %v185
      %v188 = vadd.f32 %v171, %v186
      %v189 = vadd.f32 %v172, %v187
      %v190 = vld [vmem:[%s1 + $0x2] sm:$0x1]
      %191 = vset.pattern.permute.xlu0 2
      %192 = vperm.xlu0 %191, %v147
      %v193 = vpop.permute.xlu0 %192
      %195 = vset.pattern.permute.xlu0 2
      %196 = vperm.xlu0 %195, %v148
      %v197 = vpop.permute.xlu0 %196
      %v199 = vlaneseq
      %v200 = vshrl.u32 %v199, 7
      %v201 = vsub.s32 0, %v200
      %v202 = vrot.slane %v190, %v201
      %v203 = vmul.f32 %v193, %v202
      %v204 = vmul.f32 %v197, %v202
      %v205 = vadd.f32 %v188, %v203
      %v206 = vadd.f32 %v189, %v204
      %v207 = vld [vmem:[%s1 + $0x3] sm:$0x1]
      %208 = vset.pattern.permute.xlu0 3
      %209 = vperm.xlu0 %208, %v147
      %v210 = vpop.permute.xlu0 %209
      %212 = vset.pattern.permute.xlu0 3
      %213 = vperm.xlu0 %212, %v148
      %v214 = vpop.permute.xlu0 %213
      %v216 = vlaneseq
      %v217 = vshrl.u32 %v216, 7
      %v218 = vsub.s32 0, %v217
      %v219 = vrot.slane %v207, %v218
      %v220 = vmul.f32 %v210, %v219
      %v221 = vmul.f32 %v214, %v219
      %v222 = vadd.f32 %v205, %v220
      %v223 = vadd.f32 %v206, %v221
      %v224 = vtanh.pop %v222
      %v225 = vtanh.pop %v223
      %v226 = vld [vmem:[%s1 + $0xa] sm:$0x1]
      %v227 = vld [vmem:[%s1 + $0x5] sm:$0x1]
      %229 = vset.pattern.permute.xlu0 0
      %230 = vperm.xlu0 %229, %v224
      %v231 = vpop.permute.xlu0 %230
      %234 = vset.pattern.permute.xlu0 0
      %235 = vperm.xlu0 %234, %v225
      %v236 = vpop.permute.xlu0 %235
      %v238 = vlaneseq
      %v239 = vshrl.u32 %v238, 7
      %v240 = vsub.s32 0, %v239
      %v241 = vrot.slane %v227, %v240
      %v242 = vmul.f32 %v231, %v241
      %v243 = vmul.f32 %v236, %v241
      %v244 = vlaneseq
      %v245 = vshrl.u32 %v244, 7
      %v246 = vsub.s32 0, %v245
      %v247 = vrot.slane %v226, %v246
      %v248 = vadd.f32 %v247, %v242
      %v249 = vadd.f32 %v247, %v243
      %v250 = vld [vmem:[%s1 + $0x6] sm:$0x1]
      %251 = vset.pattern.permute.xlu0 1
      %252 = vperm.xlu0 %251, %v224
      %v253 = vpop.permute.xlu0 %252
      %255 = vset.pattern.permute.xlu0 1
      %256 = vperm.xlu0 %255, %v225
      %v257 = vpop.permute.xlu0 %256
      %v259 = vlaneseq
      %v260 = vshrl.u32 %v259, 7
      %v261 = vsub.s32 0, %v260
      %v262 = vrot.slane %v250, %v261
      %v263 = vmul.f32 %v253, %v262
      %v264 = vmul.f32 %v257, %v262
      %v265 = vadd.f32 %v248, %v263
      %v266 = vadd.f32 %v249, %v264
      %v267 = vld [vmem:[%s1 + $0x7] sm:$0x1]
      %268 = vset.pattern.permute.xlu0 2
      %269 = vperm.xlu0 %268, %v224
      %v270 = vpop.permute.xlu0 %269
      %272 = vset.pattern.permute.xlu0 2
      %273 = vperm.xlu0 %272, %v225
      %v274 = vpop.permute.xlu0 %273
      %v276 = vlaneseq
      %v277 = vshrl.u32 %v276, 7
      %v278 = vsub.s32 0, %v277
      %v279 = vrot.slane %v267, %v278
      %v280 = vmul.f32 %v270, %v279
      %v281 = vmul.f32 %v274, %v279
      %v282 = vadd.f32 %v265, %v280
      %v283 = vadd.f32 %v266, %v281
      %v284 = vld [vmem:[%s1 + $0x8] sm:$0x1]
      %285 = vset.pattern.permute.xlu0 3
      %286 = vperm.xlu0 %285, %v224
      %v287 = vpop.permute.xlu0 %286
      %289 = vset.pattern.permute.xlu0 3
      %290 = vperm.xlu0 %289, %v225
      %v291 = vpop.permute.xlu0 %290
      %v293 = vlaneseq
      %v294 = vshrl.u32 %v293, 7
      %v295 = vsub.s32 0, %v294
      %v296 = vrot.slane %v284, %v295
      %v297 = vmul.f32 %v287, %v296
      %v298 = vmul.f32 %v291, %v296
      %v299 = vadd.f32 %v282, %v297
      %v300 = vadd.f32 %v283, %v298
      %v301 = vld [vmem:[%s1 + $0x9] sm:$0x1]
      %302 = vset.pattern.permute.xlu0 4
      %303 = vperm.xlu0 %302, %v224
      %v304 = vpop.permute.xlu0 %303
      %306 = vset.pattern.permute.xlu0 4
      %307 = vperm.xlu0 %306, %v225
      %v308 = vpop.permute.xlu0 %307
      %v310 = vlaneseq
      %v311 = vshrl.u32 %v310, 7
      %v312 = vsub.s32 0, %v311
      %v313 = vrot.slane %v301, %v312
      %v314 = vmul.f32 %v304, %v313
      %v315 = vmul.f32 %v308, %v313
      %v316 = vadd.f32 %v299, %v314
      %v317 = vadd.f32 %v300, %v315
      %v318 = vand.u32 2147483647, %v316
      %v319 = vand.u32 2147483647, %v317
      %v320 = vsub.f32 0.0, %v318
      %v321 = vsub.f32 0.0, %v319
      %v322 = vmul.f32 %v320, 1.442695
      %v323 = vpow.pop %v322
      %v324 = vmul.f32 %v321, 1.442695
      %v325 = vpow.pop %v324
      %vm326 = vcmp.ge.f32.partialorder %v316, 0.0
      %vm327 = vcmp.ge.f32.partialorder %v317, 0.0
      %v328 = vsel %vm326, 1.0, %v323
      %v329 = vsel %vm327, 1.0, %v325
      %v330 = vadd.f32 %v323, 1.0
      %v331 = vadd.f32 %v325, 1.0
      %v332 = vrcp.pop %v330
      %v333 = vmul.f32 %v328, %v332
      %v334 = vrcp.pop %v331
      %v335 = vmul.f32 %v329, %v334
      %v336 = vld [vmem:[%s1 + $0x10] sm:$0x1]
      %v337 = vld [vmem:[%s1 + $0xb] sm:$0x1]
      %339 = vset.pattern.permute.xlu0 0
      %340 = vperm.xlu0 %339, %v333
      %v341 = vpop.permute.xlu0 %340
      %344 = vset.pattern.permute.xlu0 0
      %345 = vperm.xlu0 %344, %v335
      %v346 = vpop.permute.xlu0 %345
      %v348 = vlaneseq
      %v349 = vshrl.u32 %v348, 7
      %v350 = vsub.s32 0, %v349
      %v351 = vrot.slane %v337, %v350
      %v352 = vmul.f32 %v341, %v351
      %v353 = vmul.f32 %v346, %v351
      %v354 = vlaneseq
      %v355 = vshrl.u32 %v354, 7
      %v356 = vsub.s32 0, %v355
      %v357 = vrot.slane %v336, %v356
      %v358 = vadd.f32 %v357, %v352
      %v359 = vadd.f32 %v357, %v353
      %v360 = vld [vmem:[%s1 + $0xc] sm:$0x1]
      %361 = vset.pattern.permute.xlu0 1
      %362 = vperm.xlu0 %361, %v333
      %v363 = vpop.permute.xlu0 %362
      %365 = vset.pattern.permute.xlu0 1
      %366 = vperm.xlu0 %365, %v335
      %v367 = vpop.permute.xlu0 %366
      %v369 = vlaneseq
      %v370 = vshrl.u32 %v369, 7
      %v371 = vsub.s32 0, %v370
      %v372 = vrot.slane %v360, %v371
      %v373 = vmul.f32 %v363, %v372
      %v374 = vmul.f32 %v367, %v372
      %v375 = vadd.f32 %v358, %v373
      %v376 = vadd.f32 %v359, %v374
      %v377 = vld [vmem:[%s1 + $0xd] sm:$0x1]
      %378 = vset.pattern.permute.xlu0 2
      %379 = vperm.xlu0 %378, %v333
      %v380 = vpop.permute.xlu0 %379
      %382 = vset.pattern.permute.xlu0 2
      %383 = vperm.xlu0 %382, %v335
      %v384 = vpop.permute.xlu0 %383
      %v386 = vlaneseq
      %v387 = vshrl.u32 %v386, 7
      %v388 = vsub.s32 0, %v387
      %v389 = vrot.slane %v377, %v388
      %v390 = vmul.f32 %v380, %v389
      %v391 = vmul.f32 %v384, %v389
      %v392 = vadd.f32 %v375, %v390
      %v393 = vadd.f32 %v376, %v391
      %v394 = vld [vmem:[%s1 + $0xe] sm:$0x1]
      %395 = vset.pattern.permute.xlu0 3
      %396 = vperm.xlu0 %395, %v333
      %v397 = vpop.permute.xlu0 %396
      %399 = vset.pattern.permute.xlu0 3
      %400 = vperm.xlu0 %399, %v335
      %v401 = vpop.permute.xlu0 %400
      %v403 = vlaneseq
      %v404 = vshrl.u32 %v403, 7
      %v405 = vsub.s32 0, %v404
      %v406 = vrot.slane %v394, %v405
      %v407 = vmul.f32 %v397, %v406
      %v408 = vmul.f32 %v401, %v406
      %v409 = vadd.f32 %v392, %v407
      %v410 = vadd.f32 %v393, %v408
      %v411 = vld [vmem:[%s1 + $0xf] sm:$0x1]
      %412 = vset.pattern.permute.xlu0 4
      %413 = vperm.xlu0 %412, %v333
      %v414 = vpop.permute.xlu0 %413
      %416 = vset.pattern.permute.xlu0 4
      %417 = vperm.xlu0 %416, %v335
      %v418 = vpop.permute.xlu0 %417
      %v420 = vlaneseq
      %v421 = vshrl.u32 %v420, 7
      %v422 = vsub.s32 0, %v421
      %v423 = vrot.slane %v411, %v422
      %v424 = vmul.f32 %v414, %v423
      %v425 = vmul.f32 %v418, %v423
      %v426 = vadd.f32 %v409, %v424
      %v427 = vadd.f32 %v410, %v425
      %v428 = vand.u32 2147483647, %v426
      %v429 = vand.u32 2147483647, %v427
      %v430 = vsub.f32 0.0, %v428
      %v431 = vsub.f32 0.0, %v429
      %v432 = vmul.f32 %v430, 1.442695
      %v433 = vpow.pop %v432
      %v434 = vmul.f32 %v431, 1.442695
      %v435 = vpow.pop %v434
      %vm436 = vcmp.ge.f32.partialorder %v426, 0.0
      %vm437 = vcmp.ge.f32.partialorder %v427, 0.0
      %v438 = vsel %vm436, 1.0, %v433
      %v439 = vsel %vm437, 1.0, %v435
      %v440 = vadd.f32 %v433, 1.0
      %v441 = vadd.f32 %v435, 1.0
      %v442 = vrcp.pop %v440
      %v443 = vmul.f32 %v438, %v442
      %v444 = vrcp.pop %v441
      %v445 = vmul.f32 %v439, %v444
      %vm446 = vcmask 15360
      %447 = vst.msk [vmem:[%s145] sm:$0xff] %vm446, %v443
      %448 = vst.msk [vmem:[%s145 + $0x8] sm:$0xff] %vm446, %v445
      %s449 = smul.u32 2, %s13
      %p450 = scmp.lt.s32.totalorder %s449, 5
      %s451 = scalar_select %p450, %s449, 5
      %s452 = smul.addr %s451, 8
      %s453 = scalar_lea.vmem %s2, %s452
      // Predicated region
      $region29: #{tpu_custom_call.1} parent=27 // pred_check
        %p454 = pneg %p78
      $region30: #{tpu_custom_call.1} parent=27 // pred_check_branch
        %456 = sbr.rel (%p454) target = $region32
      $region31: #{tpu_custom_call.1} parent=27 // pred_region
        %s457 = smul.u32 2, %s13
      $region32: #{tpu_custom_call.1} parent=27 // pred_fallthru
        _
    $region28: #{tpu_custom_call.1} parent=5 // pred_fallthru
      _
    %p458 = scmp.le.s32.totalorder 2, %s8
    // Predicated region
    $region33: #{tpu_custom_call.1} parent=5 // pred_check
      %p459 = pneg %p458
    $region34: #{tpu_custom_call.1} parent=5 // pred_check_branch
      %461 = sbr.rel (%p459) target = $region36
    $region35: #{tpu_custom_call.1} parent=5 // pred_region
      %s462 = ssub.s32 %s8, 2
      // Predicated region
      $region37: #{tpu_custom_call.1} parent=35 // pred_check
        %p463 = pneg %p84
      $region38: #{tpu_custom_call.1} parent=35 // pred_check_branch
        %465 = sbr.rel (%p463) target = $region40
      $region39: #{tpu_custom_call.1} parent=35 // pred_region
        %s466 = smul.u32 2, %s14
        %p467 = scmp.lt.s32.totalorder %s466, 5
        %s468 = scalar_select %p467, %s466, 5
        %s469 = smul.addr %s468, 8
        %s470 = scalar_lea.vmem %s2, %s469
      $region40: #{tpu_custom_call.1} parent=35 // pred_fallthru
        _
    $region36: #{tpu_custom_call.1} parent=5 // pred_fallthru
      _
  $region6: #{tpu_custom_call.1} parent=0 // loop_footer
    %s12 = sadd.s32 1, %s8
  $region7: #{tpu_custom_call.1} parent=0 // loop_footer_branch
    %7 = sbr.rel target = $region3
  $region8: #{tpu_custom_call.1} parent=0 // loop_exit
    _

</llo_original>
